<compile_context>
chip_gen: v5e
topology: v5e:2x2
jax: 0.10.0
libtpu: 0.0.40
codegen_flags: <defaults>
</compile_context>

<pallas_src>
import jax
import jax.numpy as jnp
from jax.experimental import pallas as pl
from jax.experimental.pallas import tpu as pltpu


# Set to jnp.bfloat16 for ~2x MXU throughput and half the HBM bytes on
# v6e/v7x (accumulation stays f32 via preferred_element_type); kept f32 by
# default to preserve the PyTorch module's numerics.
_MXU_DTYPE = jnp.float32
# ~512-1024 rows per tile on v5e/v6e; use ~256 on v7x (64 MiB physical VMEM).
_TARGET_TILE_ROWS = 512


# --------------------------------------------------------------------------
# Pallas kernel: one fused complex ConvTranspose1d (k=3,s=2,p=1,op=1) + CReLU
# --------------------------------------------------------------------------
def _crelu_convt_kernel(x_ref, w_ref, b_ref, o_ref):
    """One tile of TB whole examples.

    x_ref : (TB, L, 2*Cin)     [x_real | x_imag], channels-last
    w_ref : (2, 2*Cin, 4*Cout) fused +/- weights; [0] acts on x, [1] on x shifted
    b_ref : (1, 4*Cout)        [br-bi | br-bi | br+bi | br+bi]
    o_ref : (TB, L, 4*Cout)    [even_re | odd_re | even_im | odd_im]
    """
    tb, l, k1 = x_ref.shape
    rows = tb * l
    x2 = x_ref[...].reshape(rows, k1)

    # +1-shifted copy along the sequence; zero at the last position of every
    # example (examples never straddle a tile, so no cross-tile halo needed).
    xs2 = jnp.concatenate([x2[1:, :], jnp.zeros((1, k1), x2.dtype)], axis=0)
    pos = jax.lax.broadcasted_iota(jnp.int32, (rows, 1), 0) % l
    xs2 = jnp.where(pos == l - 1, jnp.zeros_like(xs2), xs2)

    # Two wide matmuls (K = 2*Cin, N = 4*Cout) instead of 14 narrow ones.
    acc = jnp.dot(x2, w_ref[0], preferred_element_type=jnp.float32)
    acc = acc + jnp.dot(xs2, w_ref[1], preferred_element_type=jnp.float32)

    y = jnp.maximum(acc + b_ref[...], 0.0)           # bias + CReLU, f32
    o_ref[...] = y.reshape(tb, l, y.shape[-1]).astype(o_ref.dtype)


def _crelu_convt_layer(x, w_fused, bias):
    """x: (N, L, 2*Cin) stacked [real | imag]; returns (N, L, 4*Cout)."""
    n, l, k1 = x.shape
    cout4 = w_fused.shape[-1]

    tb = max(1, min(n, max(1, _TARGET_TILE_ROWS // l)))
    n_tiles = pl.cdiv(n, tb)
    n_pad = n_tiles * tb

    x = x.astype(_MXU_DTYPE)
    if n_pad != n:
        x = jnp.concatenate([x, jnp.zeros((n_pad - n, l, k1), x.dtype)], axis=0)

    out = pl.pallas_call(
        _crelu_convt_kernel,
        out_shape=jax.ShapeDtypeStruct((n_pad, l, cout4), jnp.float32),
        grid_spec=pltpu.PrefetchScalarGridSpec(
            num_scalar_prefetch=0,
            grid=(n_tiles,),
            in_specs=[
                pl.BlockSpec((tb, l, k1), lambda i: (i, 0, 0)),
                pl.BlockSpec((2, k1, cout4), lambda i: (0, 0, 0)),
                pl.BlockSpec((1, cout4), lambda i: (0, 0)),
            ],
            out_specs=pl.BlockSpec((tb, l, cout4), lambda i: (i, 0, 0)),
        ),
        compiler_params=pltpu.CompilerParams(
            dimension_semantics=("parallel",)),
    )(x, w_fused.astype(_MXU_DTYPE), bias.astype(jnp.float32))
    return out[:n]


def _split_interleave(y, cout):
    """(N, L, 4*Cout) [ev_r|od_r|ev_i|od_i] -> real/imag (N, 2L, Cout).

    Pure reshapes: row l expands into positions 2l (even) and 2l+1 (odd)."""
    n, l, _ = y.shape
    out_r = y[..., :2 * cout].reshape(n, 2 * l, cout)
    out_i = y[..., 2 * cout:].reshape(n, 2 * l, cout)
    return out_r, out_i


# --------------------------------------------------------------------------
# Parameter preparation (hoisted out of the forward path)
# --------------------------------------------------------------------------
def _prep_fused(wr, wi, br, bi):
    """Build the fused +/- weight stack and bias row for one layer.

    wr/wi : (Cin, Cout, 3) PyTorch ConvTranspose1d weights, br/bi : (Cout,)
    Returns W (2, 2*Cin, 4*Cout), bias (1, 4*Cout).
    Output column layout: [ev_re | od_re | ev_im | od_im].
    """
    wr = wr.astype(jnp.float32)
    wi = wi.astype(jnp.float32)
    br = br.astype(jnp.float32)
    bi = bi.astype(jnp.float32)
    cin, cout, _ = wr.shape
    wr0, wr1, wr2 = wr[:, :, 0], wr[:, :, 1], wr[:, :, 2]
    wi0, wi1, wi2 = wi[:, :, 0], wi[:, :, 1], wi[:, :, 2]
    zero = jnp.zeros((cin, cout), jnp.float32)

    # Acts on [xr | xi]
    wa = jnp.concatenate([
        jnp.concatenate([wr1, wr2, wi1, wi2], axis=1),     # xr rows
        jnp.concatenate([-wi1, -wi2, wr1, wr2], axis=1),   # xi rows
    ], axis=0)
    # Acts on the +1-shifted [xr | xi] (only odd columns are non-zero)
    wb = jnp.concatenate([
        jnp.concatenate([zero, wr0, zero, wi0], axis=1),   # xr(+1) rows
        jnp.concatenate([zero, -wi0, zero, wr0], axis=1),  # xi(+1) rows
    ], axis=0)

    w_fused = jnp.stack([wa, wb], axis=0)                  # (2, 2*Cin, 4*Cout)
    bias = jnp.concatenate([br - bi, br - bi, br + bi, br + bi]
                           ).reshape(1, 4 * cout)
    return w_fused, bias


def prepare_params(params):
    prep = {name: _prep_fused(*params[name])
            for name in ("up_conv1", "up_conv2", "up_conv3")}
    wr, wi, br, bi = params["up_conv4"]
    prep["up_conv4"] = (wr.astype(jnp.float32), wi.astype(jnp.float32),
                        br.astype(jnp.float32), bi.astype(jnp.float32))
    return prep


# --------------------------------------------------------------------------
# Plain-jnp CReLU ConvTranspose1d (used for the tiny last layer + reference)
# --------------------------------------------------------------------------
def _crelu_convt_jnp(xr, xi, wr, wi, br, bi):
    """xr/xi: (N, L, Cin) channels-last; returns real/imag (N, 2L, Cout)."""
    n, l, _ = xr.shape
    cout = wr.shape[1]
    wr0, wr1, wr2 = wr[:, :, 0], wr[:, :, 1], wr[:, :, 2]
    wi0, wi1, wi2 = wi[:, :, 0], wi[:, :, 1], wi[:, :, 2]
    zpad = jnp.zeros((n, 1, xr.shape[-1]), xr.dtype)
    xrs = jnp.concatenate([xr[:, 1:, :], zpad], axis=1)
    xis = jnp.concatenate([xi[:, 1:, :], zpad], axis=1)

    ev_r = xr @ wr1 - xi @ wi1 + (br - bi)
    od_r = xr @ wr2 + xrs @ wr0 - xi @ wi2 - xis @ wi0 + (br - bi)
    ev_i = xi @ wr1 + xr @ wi1 + (br + bi)
    od_i = xi @ wr2 + xis @ wr0 + xr @ wi2 + xrs @ wi0 + (br + bi)

    out_r = jax.nn.relu(jnp.stack([ev_r, od_r], axis=2)).reshape(n, 2 * l, cout)
    out_i = jax.nn.relu(jnp.stack([ev_i, od_i], axis=2)).reshape(n, 2 * l, cout)
    return out_r, out_i


# --------------------------------------------------------------------------
# Forward pass (Pallas for layers 1-3, jnp for the Cout=1 layer 4)
# --------------------------------------------------------------------------
def up_crelu_conv_skip(prep, In_real, In_im,
                       skip_r16, skip_i16, skip_r32, skip_i32):
    def nlc(a):                    # PyTorch NCL -> channels-last NLC
        return jnp.transpose(a, (0, 2, 1)).astype(jnp.float32)

    n = In_real.shape[0]
    xr, xi = nlc(In_real), nlc(In_im)

    w1, b1 = prep["up_conv1"]
    y1 = _crelu_convt_layer(jnp.concatenate([xr, xi], axis=-1), w1, b1)
    up_r, up_i = _split_interleave(y1, w1.shape[-1] // 4)

    # Skip concat fused into the next layer's stacked input; channel order
    # [up | skip] matches torch.cat((up, skip), 1).
    x2 = jnp.concatenate([up_r, nlc(skip_r16), up_i, nlc(skip_i16)], axis=-1)
    w2, b2 = prep["up_conv2"]
    y2 = _crelu_convt_layer(x2, w2, b2)
    up_r, up_i = _split_interleave(y2, w2.shape[-1] // 4)

    x3 = jnp.concatenate([up_r, nlc(skip_r32), up_i, nlc(skip_i32)], axis=-1)
    w3, b3 = prep["up_conv3"]
    y3 = _crelu_convt_layer(x3, w3, b3)
    r64, i64 = _split_interleave(y3, w3.shape[-1] // 4)

    # Final layer (Cin=8, Cout=1): too small for an MXU kernel -> plain XLA.
    r128, i128 = _crelu_convt_jnp(r64, i64, *prep["up_conv4"])

    # torch.flatten(x, 1)
    return r128.reshape(n, -1), i128.reshape(n, -1)


# Pure-jnp reference of the same module (for the in-script cross-check).
def _reference_forward(params, In_real, In_im,
                       skip_r16, skip_i16, skip_r32, skip_i32):
    def nlc(a):
        return jnp.transpose(a, (0, 2, 1)).astype(jnp.float32)

    r, i = _crelu_convt_jnp(nlc(In_real), nlc(In_im), *params["up_conv1"])
    r = jnp.concatenate([r, nlc(skip_r16)], axis=-1)
    i = jnp.concatenate([i, nlc(skip_i16)], axis=-1)
    r, i = _crelu_convt_jnp(r, i, *params["up_conv2"])
    r = jnp.concatenate([r, nlc(skip_r32)], axis=-1)
    i = jnp.concatenate([i, nlc(skip_i32)], axis=-1)
    r, i = _crelu_convt_jnp(r, i, *params["up_conv3"])
    r, i = _crelu_convt_jnp(r, i, *params["up_conv4"])
    n = r.shape[0]
    return r.reshape(n, -1), i.reshape(n, -1)


# --------------------------------------------------------------------------
# Parameter init (raw PyTorch-layout params)
# --------------------------------------------------------------------------
def init_crelu_convt(key, cin, cout, k=3):
    kwr, kwi, kbr, kbi = jax.random.split(key, 4)
    scale = 1.0 / jnp.sqrt(jnp.float32(cin * k))
    wr = scale * jax.random.normal(kwr, (cin, cout, k), jnp.float32)
    wi = scale * jax.random.normal(kwi, (cin, cout, k), jnp.float32)
    br = scale * jax.random.normal(kbr, (cout,), jnp.float32)
    bi = scale * jax.random.normal(kbi, (cout,), jnp.float32)
    return (wr, wi, br, bi)


def init_params(key, in_channels=64):
    k1, k2, k3, k4 = jax.random.split(key, 4)
    return {
        "up_conv1": init_crelu_convt(k1, in_channels, 32),
        "up_conv2": init_crelu_convt(k2, 32 + 32, 16),
        "up_conv3": init_crelu_convt(k3, 16 + 16, 8),
        "up_conv4": init_crelu_convt(k4, 8, 1),
    }


if __name__ == "__main__":
    key = jax.random.PRNGKey(0)
    kp, kx = jax.random.split(key)
    params = init_params(kp, in_channels=64)
    prep = prepare_params(params)          # hoisted out of the forward path

    N, C, L = 2, 64, 8
    ks = jax.random.split(kx, 6)
    In_real = jax.random.normal(ks[0], (N, C, L), jnp.float32)
    In_im = jax.random.normal(ks[1], (N, C, L), jnp.float32)
    skip_r16 = jax.random.normal(ks[2], (N, 32, 2 * L), jnp.float32)
    skip_i16 = jax.random.normal(ks[3], (N, 32, 2 * L), jnp.float32)
    skip_r32 = jax.random.normal(ks[4], (N, 16, 4 * L), jnp.float32)
    skip_i32 = jax.random.normal(ks[5], (N, 16, 4 * L), jnp.float32)

    out_r, out_i = jax.jit(up_crelu_conv_skip)(
        prep, In_real, In_im, skip_r16, skip_i16, skip_r32, skip_i32)
    jax.block_until_ready((out_r, out_i))

    assert out_r.shape == (N, 16 * L), out_r.shape
    assert out_i.shape == (N, 16 * L), out_i.shape
    assert jnp.all(jnp.isfinite(out_r)) and jnp.all(jnp.isfinite(out_i))

    # Cross-check the Pallas path against a plain-jnp implementation.
    ref_r, ref_i = jax.jit(_reference_forward)(
        params, In_real, In_im, skip_r16, skip_i16, skip_r32, skip_i32)
    jax.block_until_ready((ref_r, ref_i))
    err = max(float(jnp.max(jnp.abs(out_r - ref_r))),
              float(jnp.max(jnp.abs(out_i - ref_i))))
    assert err < 2e-2, f"mismatch vs reference: {err}"

    print("KERNEL_OK")
</pallas_src>

<mosaic_0001>
module attributes {stable_mosaic.version = 11 : i64} {
  func.func @_crelu_convt_kernel(%arg0: i32, %arg1: memref<2x8x128xf32, #tpu.memory_space<vmem>>, %arg2: memref<2x128x128xf32, #tpu.memory_space<vmem>>, %arg3: memref<1x128xf32, #tpu.memory_space<vmem>>, %arg4: memref<2x8x128xf32, #tpu.memory_space<vmem>>) attributes {dimension_semantics = [#tpu.dimension_semantics<parallel>], iteration_bounds = array<i64: 1>, scalar_prefetch = 0 : i64, scratch_operands = 0 : i64, tpu.core_type = #tpu.core_type<tc>, window_params = [{transform_indices = @transform_0, window_bounds = array<i64: 2, 8, 128>}, {pipeline_mode = #tpu.pipeline_mode<synchronous>, transform_indices = @transform_1, window_bounds = array<i64: 2, 128, 128>}, {pipeline_mode = #tpu.pipeline_mode<synchronous>, transform_indices = @transform_2, window_bounds = array<i64: 1, 128>}, {transform_indices = @transform_3, window_bounds = array<i64: 2, 8, 128>}]} {
    %c0 = arith.constant 0 : index
    %c0_0 = arith.constant 0 : index
    %c0_1 = arith.constant 0 : index
    %0 = vector.load %arg1[%c0, %c0_0, %c0_1] : memref<2x8x128xf32, #tpu.memory_space<vmem>>, vector<2x8x128xf32>
    %1 = vector.shape_cast %0 : vector<2x8x128xf32> to vector<16x128xf32>
    %2 = vector.extract_strided_slice %1 {offsets = [1, 0], sizes = [15, 128], strides = [1, 1]} : vector<16x128xf32> to vector<15x128xf32>
    %cst = arith.constant 0.000000e+00 : f32
    %3 = vector.broadcast %cst : f32 to vector<1x128xf32>
    %4 = tpu.concatenate %2, %3 in 0 : vector<15x128xf32>, vector<1x128xf32> -> vector<16x128xf32>
    %5 = tpu.iota {dimensions = array<i32: 0>} : vector<16x1xi32>
    %c8_i32 = arith.constant 8 : i32
    %c0_i32 = arith.constant 0 : i32
    %6 = arith.cmpi eq, %c8_i32, %c0_i32 : i32
    %c1_i32 = arith.constant 1 : i32
    %7 = arith.select %6, %c1_i32, %c8_i32 : i32
    %8 = vector.broadcast %7 : i32 to vector<16x1xi32>
    %9 = arith.remsi %5, %8 : vector<16x1xi32>
    %c0_i32_2 = arith.constant 0 : i32
    %10 = vector.broadcast %c0_i32_2 : i32 to vector<16x1xi32>
    %11 = arith.cmpi ne, %9, %10 : vector<16x1xi32>
    %c0_i32_3 = arith.constant 0 : i32
    %12 = vector.broadcast %c0_i32_3 : i32 to vector<16x1xi32>
    %13 = arith.cmpi slt, %9, %12 : vector<16x1xi32>
    %c0_i32_4 = arith.constant 0 : i32
    %14 = arith.cmpi slt, %7, %c0_i32_4 : i32
    %15 = vector.broadcast %14 : i1 to vector<16x1xi1>
    %16 = vector.broadcast %15 : vector<16x1xi1> to vector<16x1xi1>
    %17 = arith.xori %13, %16 : vector<16x1xi1>
    %18 = arith.andi %17, %11 : vector<16x1xi1>
    %19 = vector.broadcast %7 : i32 to vector<16x1xi32>
    %20 = arith.addi %9, %19 : vector<16x1xi32>
    %21 = arith.select %18, %20, %9 : vector<16x1xi1>, vector<16x1xi32>
    %c7_i32 = arith.constant 7 : i32
    %22 = vector.broadcast %c7_i32 : i32 to vector<16x1xi32>
    %23 = arith.cmpi eq, %21, %22 : vector<16x1xi32>
    %cst_5 = arith.constant 0.000000e+00 : f32
    %24 = vector.broadcast %cst_5 : f32 to vector<16x128xf32>
    %25 = vector.shape_cast %23 : vector<16x1xi1> to vector<16x1xi1>
    %26 = vector.broadcast %25 : vector<16x1xi1> to vector<16x128xi1>
    %27 = arith.select %26, %24, %4 : vector<16x128xi1>, vector<16x128xf32>
    %c0_6 = arith.constant 0 : index
    %c0_7 = arith.constant 0 : index
    %c0_8 = arith.constant 0 : index
    %28 = vector.load %arg2[%c0_6, %c0_7, %c0_8] : memref<2x128x128xf32, #tpu.memory_space<vmem>>, vector<1x128x128xf32>
    %29 = vector.shape_cast %28 : vector<1x128x128xf32> to vector<128x128xf32>
    %cst_9 = arith.constant dense<0.000000e+00> : vector<16x128xf32>
    %30 = tpu.matmul %1, %29, %cst_9 {dimension_numbers = #tpu.dot_dimension_numbers<[1], [0], [0], [1], [0, 0, 1, 1], [], []>} : vector<16x128xf32>, vector<128x128xf32>, vector<16x128xf32> -> vector<16x128xf32>
    %c1 = arith.constant 1 : index
    %c0_10 = arith.constant 0 : index
    %c0_11 = arith.constant 0 : index
    %31 = vector.load %arg2[%c1, %c0_10, %c0_11] : memref<2x128x128xf32, #tpu.memory_space<vmem>>, vector<1x128x128xf32>
    %32 = vector.shape_cast %31 : vector<1x128x128xf32> to vector<128x128xf32>
    %cst_12 = arith.constant dense<0.000000e+00> : vector<16x128xf32>
    %33 = tpu.matmul %27, %32, %cst_12 {dimension_numbers = #tpu.dot_dimension_numbers<[1], [0], [0], [1], [0, 0, 1, 1], [], []>} : vector<16x128xf32>, vector<128x128xf32>, vector<16x128xf32> -> vector<16x128xf32>
    %34 = arith.addf %30, %33 : vector<16x128xf32>
    %c0_13 = arith.constant 0 : index
    %c0_14 = arith.constant 0 : index
    %35 = vector.load %arg3[%c0_13, %c0_14] : memref<1x128xf32, #tpu.memory_space<vmem>>, vector<1x128xf32>
    %36 = vector.broadcast %35 : vector<1x128xf32> to vector<16x128xf32>
    %37 = arith.addf %34, %36 : vector<16x128xf32>
    %cst_15 = arith.constant 0.000000e+00 : f32
    %38 = vector.broadcast %cst_15 : f32 to vector<16x128xf32>
    %39 = arith.maximumf %37, %38 : vector<16x128xf32>
    %40 = vector.shape_cast %39 : vector<16x128xf32> to vector<2x8x128xf32>
    %c0_16 = arith.constant 0 : index
    %c0_17 = arith.constant 0 : index
    %c0_18 = arith.constant 0 : index
    %41 = vector.load %arg4[%c0_16, %c0_17, %c0_18] : memref<2x8x128xf32, #tpu.memory_space<vmem>>, vector<2x8x128xf32>
    tpu.vector_store %arg4[%c0_16, %c0_17, %c0_18], %40 {strides = array<i32>} : memref<2x8x128xf32, #tpu.memory_space<vmem>>, vector<2x8x128xf32>,
    return
  }
  func.func @transform_0(%arg0: i32) -> (i32, i32, i32) {
    %c0_i32 = arith.constant 0 : i32
    %c0_i32_0 = arith.constant 0 : i32
    %c0_i32_1 = arith.constant 0 : i32
    return %arg0, %c0_i32, %c0_i32_0 : i32, i32, i32
  }
  func.func @transform_1(%arg0: i32) -> (i32, i32, i32) {
    %c0_i32 = arith.constant 0 : i32
    %c0_i32_0 = arith.constant 0 : i32
    %c0_i32_1 = arith.constant 0 : i32
    %c0_i32_2 = arith.constant 0 : i32
    return %c0_i32, %c0_i32_0, %c0_i32_1 : i32, i32, i32
  }
  func.func @transform_2(%arg0: i32) -> (i32, i32) {
    %c0_i32 = arith.constant 0 : i32
    %c0_i32_0 = arith.constant 0 : i32
    %c0_i32_1 = arith.constant 0 : i32
    return %c0_i32, %c0_i32_0 : i32, i32
  }
  func.func @transform_3(%arg0: i32) -> (i32, i32, i32) {
    %c0_i32 = arith.constant 0 : i32
    %c0_i32_0 = arith.constant 0 : i32
    %c0_i32_1 = arith.constant 0 : i32
    return %arg0, %c0_i32, %c0_i32_0 : i32, i32, i32
  }
}

module attributes {stable_mosaic.version = 11 : i64} {
  func.func @_crelu_convt_kernel(%arg0: i32, %arg1: memref<2x16x128xf32, #tpu.memory_space<vmem>>, %arg2: memref<2x128x64xf32, #tpu.memory_space<vmem>>, %arg3: memref<1x64xf32, #tpu.memory_space<vmem>>, %arg4: memref<2x16x64xf32, #tpu.memory_space<vmem>>) attributes {dimension_semantics = [#tpu.dimension_semantics<parallel>], iteration_bounds = array<i64: 1>, scalar_prefetch = 0 : i64, scratch_operands = 0 : i64, tpu.core_type = #tpu.core_type<tc>, window_params = [{transform_indices = @transform_0, window_bounds = array<i64: 2, 16, 128>}, {pipeline_mode = #tpu.pipeline_mode<synchronous>, transform_indices = @transform_1, window_bounds = array<i64: 2, 128, 64>}, {pipeline_mode = #tpu.pipeline_mode<synchronous>, transform_indices = @transform_2, window_bounds = array<i64: 1, 64>}, {transform_indices = @transform_3, window_bounds = array<i64: 2, 16, 64>}]} {
    %c0 = arith.constant 0 : index
    %c0_0 = arith.constant 0 : index
    %c0_1 = arith.constant 0 : index
    %0 = vector.load %arg1[%c0, %c0_0, %c0_1] : memref<2x16x128xf32, #tpu.memory_space<vmem>>, vector<2x16x128xf32>
    %1 = vector.shape_cast %0 : vector<2x16x128xf32> to vector<32x128xf32>
    %2 = vector.extract_strided_slice %1 {offsets = [1, 0], sizes = [31, 128], strides = [1, 1]} : vector<32x128xf32> to vector<31x128xf32>
    %cst = arith.constant 0.000000e+00 : f32
    %3 = vector.broadcast %cst : f32 to vector<1x128xf32>
    %4 = tpu.concatenate %2, %3 in 0 : vector<31x128xf32>, vector<1x128xf32> -> vector<32x128xf32>
    %5 = tpu.iota {dimensions = array<i32: 0>} : vector<32x1xi32>
    %c16_i32 = arith.constant 16 : i32
    %c0_i32 = arith.constant 0 : i32
    %6 = arith.cmpi eq, %c16_i32, %c0_i32 : i32
    %c1_i32 = arith.constant 1 : i32
    %7 = arith.select %6, %c1_i32, %c16_i32 : i32
    %8 = vector.broadcast %7 : i32 to vector<32x1xi32>
    %9 = arith.remsi %5, %8 : vector<32x1xi32>
    %c0_i32_2 = arith.constant 0 : i32
    %10 = vector.broadcast %c0_i32_2 : i32 to vector<32x1xi32>
    %11 = arith.cmpi ne, %9, %10 : vector<32x1xi32>
    %c0_i32_3 = arith.constant 0 : i32
    %12 = vector.broadcast %c0_i32_3 : i32 to vector<32x1xi32>
    %13 = arith.cmpi slt, %9, %12 : vector<32x1xi32>
    %c0_i32_4 = arith.constant 0 : i32
    %14 = arith.cmpi slt, %7, %c0_i32_4 : i32
    %15 = vector.broadcast %14 : i1 to vector<32x1xi1>
    %16 = vector.broadcast %15 : vector<32x1xi1> to vector<32x1xi1>
    %17 = arith.xori %13, %16 : vector<32x1xi1>
    %18 = arith.andi %17, %11 : vector<32x1xi1>
    %19 = vector.broadcast %7 : i32 to vector<32x1xi32>
    %20 = arith.addi %9, %19 : vector<32x1xi32>
    %21 = arith.select %18, %20, %9 : vector<32x1xi1>, vector<32x1xi32>
    %c15_i32 = arith.constant 15 : i32
    %22 = vector.broadcast %c15_i32 : i32 to vector<32x1xi32>
    %23 = arith.cmpi eq, %21, %22 : vector<32x1xi32>
    %cst_5 = arith.constant 0.000000e+00 : f32
    %24 = vector.broadcast %cst_5 : f32 to vector<32x128xf32>
    %25 = vector.shape_cast %23 : vector<32x1xi1> to vector<32x1xi1>
    %26 = vector.broadcast %25 : vector<32x1xi1> to vector<32x128xi1>
    %27 = arith.select %26, %24, %4 : vector<32x128xi1>, vector<32x128xf32>
    %c0_6 = arith.constant 0 : index
    %c0_7 = arith.constant 0 : index
    %c0_8 = arith.constant 0 : index
    %28 = vector.load %arg2[%c0_6, %c0_7, %c0_8] : memref<2x128x64xf32, #tpu.memory_space<vmem>>, vector<1x128x64xf32>
    %29 = vector.shape_cast %28 : vector<1x128x64xf32> to vector<128x64xf32>
    %cst_9 = arith.constant dense<0.000000e+00> : vector<32x64xf32>
    %30 = tpu.matmul %1, %29, %cst_9 {dimension_numbers = #tpu.dot_dimension_numbers<[1], [0], [0], [1], [0, 0, 1, 1], [], []>} : vector<32x128xf32>, vector<128x64xf32>, vector<32x64xf32> -> vector<32x64xf32>
    %c1 = arith.constant 1 : index
    %c0_10 = arith.constant 0 : index
    %c0_11 = arith.constant 0 : index
    %31 = vector.load %arg2[%c1, %c0_10, %c0_11] : memref<2x128x64xf32, #tpu.memory_space<vmem>>, vector<1x128x64xf32>
    %32 = vector.shape_cast %31 : vector<1x128x64xf32> to vector<128x64xf32>
    %cst_12 = arith.constant dense<0.000000e+00> : vector<32x64xf32>
    %33 = tpu.matmul %27, %32, %cst_12 {dimension_numbers = #tpu.dot_dimension_numbers<[1], [0], [0], [1], [0, 0, 1, 1], [], []>} : vector<32x128xf32>, vector<128x64xf32>, vector<32x64xf32> -> vector<32x64xf32>
    %34 = arith.addf %30, %33 : vector<32x64xf32>
    %c0_13 = arith.constant 0 : index
    %c0_14 = arith.constant 0 : index
    %35 = vector.load %arg3[%c0_13, %c0_14] : memref<1x64xf32, #tpu.memory_space<vmem>>, vector<1x64xf32>
    %36 = vector.broadcast %35 : vector<1x64xf32> to vector<32x64xf32>
    %37 = arith.addf %34, %36 : vector<32x64xf32>
    %cst_15 = arith.constant 0.000000e+00 : f32
    %38 = vector.broadcast %cst_15 : f32 to vector<32x64xf32>
    %39 = arith.maximumf %37, %38 : vector<32x64xf32>
    %40 = vector.shape_cast %39 : vector<32x64xf32> to vector<2x16x64xf32>
    %c0_16 = arith.constant 0 : index
    %c0_17 = arith.constant 0 : index
    %c0_18 = arith.constant 0 : index
    %41 = vector.load %arg4[%c0_16, %c0_17, %c0_18] : memref<2x16x64xf32, #tpu.memory_space<vmem>>, vector<2x16x64xf32>
    tpu.vector_store %arg4[%c0_16, %c0_17, %c0_18], %40 {strides = array<i32>} : memref<2x16x64xf32, #tpu.memory_space<vmem>>, vector<2x16x64xf32>,
    return
  }
  func.func @transform_0(%arg0: i32) -> (i32, i32, i32) {
    %c0_i32 = arith.constant 0 : i32
    %c0_i32_0 = arith.constant 0 : i32
    %c0_i32_1 = arith.constant 0 : i32
    return %arg0, %c0_i32, %c0_i32_0 : i32, i32, i32
  }
  func.func @transform_1(%arg0: i32) -> (i32, i32, i32) {
    %c0_i32 = arith.constant 0 : i32
    %c0_i32_0 = arith.constant 0 : i32
    %c0_i32_1 = arith.constant 0 : i32
    %c0_i32_2 = arith.constant 0 : i32
    return %c0_i32, %c0_i32_0, %c0_i32_1 : i32, i32, i32
  }
  func.func @transform_2(%arg0: i32) -> (i32, i32) {
    %c0_i32 = arith.constant 0 : i32
    %c0_i32_0 = arith.constant 0 : i32
    %c0_i32_1 = arith.constant 0 : i32
    return %c0_i32, %c0_i32_0 : i32, i32
  }
  func.func @transform_3(%arg0: i32) -> (i32, i32, i32) {
    %c0_i32 = arith.constant 0 : i32
    %c0_i32_0 = arith.constant 0 : i32
    %c0_i32_1 = arith.constant 0 : i32
    return %arg0, %c0_i32, %c0_i32_0 : i32, i32, i32
  }
}

module attributes {stable_mosaic.version = 11 : i64} {
  func.func @_crelu_convt_kernel(%arg0: i32, %arg1: memref<2x32x64xf32, #tpu.memory_space<vmem>>, %arg2: memref<2x64x32xf32, #tpu.memory_space<vmem>>, %arg3: memref<1x32xf32, #tpu.memory_space<vmem>>, %arg4: memref<2x32x32xf32, #tpu.memory_space<vmem>>) attributes {dimension_semantics = [#tpu.dimension_semantics<parallel>], iteration_bounds = array<i64: 1>, scalar_prefetch = 0 : i64, scratch_operands = 0 : i64, tpu.core_type = #tpu.core_type<tc>, window_params = [{transform_indices = @transform_0, window_bounds = array<i64: 2, 32, 64>}, {pipeline_mode = #tpu.pipeline_mode<synchronous>, transform_indices = @transform_1, window_bounds = array<i64: 2, 64, 32>}, {pipeline_mode = #tpu.pipeline_mode<synchronous>, transform_indices = @transform_2, window_bounds = array<i64: 1, 32>}, {transform_indices = @transform_3, window_bounds = array<i64: 2, 32, 32>}]} {
    %c0 = arith.constant 0 : index
    %c0_0 = arith.constant 0 : index
    %c0_1 = arith.constant 0 : index
    %0 = vector.load %arg1[%c0, %c0_0, %c0_1] : memref<2x32x64xf32, #tpu.memory_space<vmem>>, vector<2x32x64xf32>
    %1 = vector.shape_cast %0 : vector<2x32x64xf32> to vector<64x64xf32>
    %2 = vector.extract_strided_slice %1 {offsets = [1, 0], sizes = [63, 64], strides = [1, 1]} : vector<64x64xf32> to vector<63x64xf32>
    %cst = arith.constant 0.000000e+00 : f32
    %3 = vector.broadcast %cst : f32 to vector<1x64xf32>
    %4 = tpu.concatenate %2, %3 in 0 : vector<63x64xf32>, vector<1x64xf32> -> vector<64x64xf32>
    %5 = tpu.iota {dimensions = array<i32: 0>} : vector<64x1xi32>
    %c32_i32 = arith.constant 32 : i32
    %c0_i32 = arith.constant 0 : i32
    %6 = arith.cmpi eq, %c32_i32, %c0_i32 : i32
    %c1_i32 = arith.constant 1 : i32
    %7 = arith.select %6, %c1_i32, %c32_i32 : i32
    %8 = vector.broadcast %7 : i32 to vector<64x1xi32>
    %9 = arith.remsi %5, %8 : vector<64x1xi32>
    %c0_i32_2 = arith.constant 0 : i32
    %10 = vector.broadcast %c0_i32_2 : i32 to vector<64x1xi32>
    %11 = arith.cmpi ne, %9, %10 : vector<64x1xi32>
    %c0_i32_3 = arith.constant 0 : i32
    %12 = vector.broadcast %c0_i32_3 : i32 to vector<64x1xi32>
    %13 = arith.cmpi slt, %9, %12 : vector<64x1xi32>
    %c0_i32_4 = arith.constant 0 : i32
    %14 = arith.cmpi slt, %7, %c0_i32_4 : i32
    %15 = vector.broadcast %14 : i1 to vector<64x1xi1>
    %16 = vector.broadcast %15 : vector<64x1xi1> to vector<64x1xi1>
    %17 = arith.xori %13, %16 : vector<64x1xi1>
    %18 = arith.andi %17, %11 : vector<64x1xi1>
    %19 = vector.broadcast %7 : i32 to vector<64x1xi32>
    %20 = arith.addi %9, %19 : vector<64x1xi32>
    %21 = arith.select %18, %20, %9 : vector<64x1xi1>, vector<64x1xi32>
    %c31_i32 = arith.constant 31 : i32
    %22 = vector.broadcast %c31_i32 : i32 to vector<64x1xi32>
    %23 = arith.cmpi eq, %21, %22 : vector<64x1xi32>
    %cst_5 = arith.constant 0.000000e+00 : f32
    %24 = vector.broadcast %cst_5 : f32 to vector<64x64xf32>
    %25 = vector.shape_cast %23 : vector<64x1xi1> to vector<64x1xi1>
    %26 = vector.broadcast %25 : vector<64x1xi1> to vector<64x64xi1>
    %27 = arith.select %26, %24, %4 : vector<64x64xi1>, vector<64x64xf32>
    %c0_6 = arith.constant 0 : index
    %c0_7 = arith.constant 0 : index
    %c0_8 = arith.constant 0 : index
    %28 = vector.load %arg2[%c0_6, %c0_7, %c0_8] : memref<2x64x32xf32, #tpu.memory_space<vmem>>, vector<1x64x32xf32>
    %29 = vector.shape_cast %28 : vector<1x64x32xf32> to vector<64x32xf32>
    %cst_9 = arith.constant dense<0.000000e+00> : vector<64x32xf32>
    %30 = tpu.matmul %1, %29, %cst_9 {dimension_numbers = #tpu.dot_dimension_numbers<[1], [0], [0], [1], [0, 0, 1, 1], [], []>} : vector<64x64xf32>, vector<64x32xf32>, vector<64x32xf32> -> vector<64x32xf32>
    %c1 = arith.constant 1 : index
    %c0_10 = arith.constant 0 : index
    %c0_11 = arith.constant 0 : index
    %31 = vector.load %arg2[%c1, %c0_10, %c0_11] : memref<2x64x32xf32, #tpu.memory_space<vmem>>, vector<1x64x32xf32>
    %32 = vector.shape_cast %31 : vector<1x64x32xf32> to vector<64x32xf32>
    %cst_12 = arith.constant dense<0.000000e+00> : vector<64x32xf32>
    %33 = tpu.matmul %27, %32, %cst_12 {dimension_numbers = #tpu.dot_dimension_numbers<[1], [0], [0], [1], [0, 0, 1, 1], [], []>} : vector<64x64xf32>, vector<64x32xf32>, vector<64x32xf32> -> vector<64x32xf32>
    %34 = arith.addf %30, %33 : vector<64x32xf32>
    %c0_13 = arith.constant 0 : index
    %c0_14 = arith.constant 0 : index
    %35 = vector.load %arg3[%c0_13, %c0_14] : memref<1x32xf32, #tpu.memory_space<vmem>>, vector<1x32xf32>
    %36 = vector.broadcast %35 : vector<1x32xf32> to vector<64x32xf32>
    %37 = arith.addf %34, %36 : vector<64x32xf32>
    %cst_15 = arith.constant 0.000000e+00 : f32
    %38 = vector.broadcast %cst_15 : f32 to vector<64x32xf32>
    %39 = arith.maximumf %37, %38 : vector<64x32xf32>
    %40 = vector.shape_cast %39 : vector<64x32xf32> to vector<2x32x32xf32>
    %c0_16 = arith.constant 0 : index
    %c0_17 = arith.constant 0 : index
    %c0_18 = arith.constant 0 : index
    %41 = vector.load %arg4[%c0_16, %c0_17, %c0_18] : memref<2x32x32xf32, #tpu.memory_space<vmem>>, vector<2x32x32xf32>
    tpu.vector_store %arg4[%c0_16, %c0_17, %c0_18], %40 {strides = array<i32>} : memref<2x32x32xf32, #tpu.memory_space<vmem>>, vector<2x32x32xf32>,
    return
  }
  func.func @transform_0(%arg0: i32) -> (i32, i32, i32) {
    %c0_i32 = arith.constant 0 : i32
    %c0_i32_0 = arith.constant 0 : i32
    %c0_i32_1 = arith.constant 0 : i32
    return %arg0, %c0_i32, %c0_i32_0 : i32, i32, i32
  }
  func.func @transform_1(%arg0: i32) -> (i32, i32, i32) {
    %c0_i32 = arith.constant 0 : i32
    %c0_i32_0 = arith.constant 0 : i32
    %c0_i32_1 = arith.constant 0 : i32
    %c0_i32_2 = arith.constant 0 : i32
    return %c0_i32, %c0_i32_0, %c0_i32_1 : i32, i32, i32
  }
  func.func @transform_2(%arg0: i32) -> (i32, i32) {
    %c0_i32 = arith.constant 0 : i32
    %c0_i32_0 = arith.constant 0 : i32
    %c0_i32_1 = arith.constant 0 : i32
    return %c0_i32, %c0_i32_0 : i32, i32
  }
  func.func @transform_3(%arg0: i32) -> (i32, i32, i32) {
    %c0_i32 = arith.constant 0 : i32
    %c0_i32_0 = arith.constant 0 : i32
    %c0_i32_1 = arith.constant 0 : i32
    return %arg0, %c0_i32, %c0_i32_0 : i32, i32, i32
  }
}

</mosaic_0001>

<llo_original>
// kernel: up_crelu_conv_skip.3
$region0: #{up_crelu_conv_skip.3}
  #allocation0 [shape = 'u32[]', space=smem, size = 0x4, offset = 0x4, fixed_abs, tag = 'smem constant byte address 0x4 - core index']
  #allocation1 [shape = 'u32[72,128]{1,0:T(1,128)}', space=vmem, size = 0x9000, scoped, tag = 'internal scratch']
  %s0 = inlined_call_operand.vmem [shape: f32[2,8,128], index: 0, kind: input, shape index: {}]
  %s1 = inlined_call_operand.hbm [shape: f32[2,128,128], index: 1, kind: input, shape index: {}]
  %s2 = inlined_call_operand.vmem [shape: f32[1,128], index: 2, kind: input, shape index: {}]
  %s3 = inlined_call_operand.vmem [shape: f32[2,8,128], index: 3, kind: output, shape index: {}]
  %s4 = sld [smem:[#allocation0]]
  $region26: #{up_crelu_conv_skip.3} parent=0
    _
  %s6 = ssub.s32 1, %s4
  %s7 = scalar_select 0, %s6, %s4
  $region1: #{up_crelu_conv_skip.3} parent=0
    #allocation2 [shape = 'u8[131072]{0}', space=vmem, size = 0x20000, scoped, tag = 'input window, operand 1, single buffered']
    #allocation3 [shape = 's32[1]{0}', space=sflag, size = 0x4, scoped, tag = 'scoped memory for up_crelu_conv_skip.3']
    %8 = vsyncpa [#allocation3], 0
    // Predicated region
    $region2: #{up_crelu_conv_skip.3} parent=1 // pred_check
      _
    $region3: #{up_crelu_conv_skip.3} parent=1 // pred_check_branch
      %10 = sbr.rel (0) target = $region5
    $region4: #{up_crelu_conv_skip.3} parent=1 // pred_region
      _
    $region5: #{up_crelu_conv_skip.3} parent=1 // pred_fallthru
      _
    // Predicated region
    $region6: #{up_crelu_conv_skip.3} parent=1 // pred_check
      _
    $region7: #{up_crelu_conv_skip.3} parent=1 // pred_check_branch
      %12 = sbr.rel (0) target = $region9
    $region8: #{up_crelu_conv_skip.3} parent=1 // pred_region
      %14 = vsyncadd [#allocation3], 0
      %s15 = sshll.u32 %s1, 4
      %s16 = int_to_ptr.hbm [resolvable:$true] %s15
      %s17 = sshll.u32 [#allocation2], 4
      %s18 = int_to_ptr.vmem [resolvable:$true] %s17
      %23 = dma.hbm_to_vmem [thread:$0]  %s16, 4096, %s18, [#allocation3], 128, 128, 8
    $region9: #{up_crelu_conv_skip.3} parent=1 // pred_fallthru
      _
    // Predicated region
    $region10: #{up_crelu_conv_skip.3} parent=1 // pred_check
      _
    $region11: #{up_crelu_conv_skip.3} parent=1 // pred_check_branch
      %25 = sbr.rel (0) target = $region13
    $region12: #{up_crelu_conv_skip.3} parent=1 // pred_region
      _
    $region13: #{up_crelu_conv_skip.3} parent=1 // pred_fallthru
      _
    // Predicated region
    $region14: #{up_crelu_conv_skip.3} parent=1 // pred_check
      _
    $region15: #{up_crelu_conv_skip.3} parent=1 // pred_check_branch
      %27 = sbr.rel (0) target = $region17
    $region16: #{up_crelu_conv_skip.3} parent=1 // pred_region
      %29 = dma.done [#allocation3], 4096
    $region17: #{up_crelu_conv_skip.3} parent=1 // pred_fallthru
      _
    %v30 = vld [vmem:[%s0] sm:$0xff]
    %v31 = vld [vmem:[%s0 + $0x8] sm:$0xff]
    %vm34 = vcmask 1046528
    %v35 = vrot.slane %v30, 1
    %v36 = vrot.slane %v31, 1
    %v37 = vsel %vm34, %v35, %v36
    %v40 = vsel %vm34, %v36, 0.0
    %v41 = vlaneseq
    %v42 = vshrl.u32 %v41, 7
    %v43 = vadd.s32 %v42, 8
    %vm44 = vcmp.lt.s32.totalorder %v42, 0
    %v45 = vsub.s32 0, %v42
    %v46 = vsel %vm44, %v45, %v42
    %v47 = vshrl.u32 %v46, 3
    %v48 = vand.u32 %v46, 7
    %v49 = vsub.s32 0, %v48
    %v50 = vsel %vm44, %v49, %v48
    %vm51 = vcmp.lt.s32.totalorder %v43, 0
    %v52 = vsub.s32 0, %v43
    %v53 = vsel %vm51, %v52, %v43
    %v54 = vshrl.u32 %v53, 3
    %v55 = vand.u32 %v53, 7
    %v56 = vsub.s32 0, %v55
    %v57 = vsel %vm51, %v56, %v55
    %vm58 = vcmp.ne.s32.totalorder %v50, 0
    %vm59 = vcmp.ne.s32.totalorder %v57, 0
    %vm60 = vcmp.lt.s32.totalorder %v50, 0
    %vm61 = vcmp.lt.s32.totalorder %v57, 0
    %vm62 = vmand %vm60, %vm58
    %vm63 = vmand %vm61, %vm59
    %v64 = vadd.s32 %v50, 8
    %v65 = vadd.s32 %v57, 8
    %v66 = vsel %vm62, %v64, %v50
    %v67 = vsel %vm63, %v65, %v57
    %vm68 = vcmp.eq.s32.totalorder %v66, 7
    %vm69 = vcmp.eq.s32.totalorder %v67, 7
    %v70 = vsel %vm68, 1, 0
    %v71 = vsel %vm69, 1, 0
    %vm72 = vcmp.eq.s32.totalorder %v70, 1
    %vm73 = vcmp.eq.s32.totalorder %v71, 1
    %v74 = vsel %vm72, 0.0, %v37
    %v75 = vsel %vm73, 0.0, %v40
    %v76 = vld [vmem:[#allocation2] sm:$0xff]
    %v77 = vld [vmem:[#allocation2 + $0x8] sm:$0xff]
    %v78 = vld [vmem:[#allocation2 + $0x10] sm:$0xff]
    %v79 = vld [vmem:[#allocation2 + $0x18] sm:$0xff]
    %v80 = vld [vmem:[#allocation2 + $0x20] sm:$0xff]
    %v81 = vld [vmem:[#allocation2 + $0x28] sm:$0xff]
    %v82 = vld [vmem:[#allocation2 + $0x30] sm:$0xff]
    %v83 = vld [vmem:[#allocation2 + $0x38] sm:$0xff]
    %v84 = vld [vmem:[#allocation2 + $0x40] sm:$0xff]
    %v85 = vld [vmem:[#allocation2 + $0x48] sm:$0xff]
    %v86 = vld [vmem:[#allocation2 + $0x50] sm:$0xff]
    %v87 = vld [vmem:[#allocation2 + $0x58] sm:$0xff]
    %v88 = vld [vmem:[#allocation2 + $0x60] sm:$0xff]
    %v89 = vld [vmem:[#allocation2 + $0x68] sm:$0xff]
    %v90 = vld [vmem:[#allocation2 + $0x70] sm:$0xff]
    %v91 = vld [vmem:[#allocation2 + $0x78] sm:$0xff]
    %s92 = scalar_lea.vmem [#allocation2], 128
    %v93 = vld [vmem:[%s92] sm:$0xff]
    %v94 = vld [vmem:[%s92 + $0x8] sm:$0xff]
    %v95 = vld [vmem:[%s92 + $0x10] sm:$0xff]
    %v96 = vld [vmem:[%s92 + $0x18] sm:$0xff]
    %v97 = vld [vmem:[%s92 + $0x20] sm:$0xff]
    %v98 = vld [vmem:[%s92 + $0x28] sm:$0xff]
    %v99 = vld [vmem:[%s92 + $0x30] sm:$0xff]
    %v100 = vld [vmem:[%s92 + $0x38] sm:$0xff]
    %v101 = vld [vmem:[%s92 + $0x40] sm:$0xff]
    %v102 = vld [vmem:[%s92 + $0x48] sm:$0xff]
    %v103 = vld [vmem:[%s92 + $0x50] sm:$0xff]
    %v104 = vld [vmem:[%s92 + $0x58] sm:$0xff]
    %v105 = vld [vmem:[%s92 + $0x60] sm:$0xff]
    %v106 = vld [vmem:[%s92 + $0x68] sm:$0xff]
    %v107 = vld [vmem:[%s92 + $0x70] sm:$0xff]
    %v108 = vld [vmem:[%s92 + $0x78] sm:$0xff]
    %109 = vmatpush.msra.mxu0 %v108
    %110 = vmatpush.msra.mxu0 %v107
    %111 = vmatpush.msra.mxu0 %v106
    %112 = vmatpush.msra.mxu0 %v105
    %113 = vmatpush.msra.mxu0 %v104
    %114 = vmatpush.msra.mxu0 %v103
    %115 = vmatpush.msra.mxu0 %v102
    %116 = vmatpush.msra.mxu0 %v101
    %117 = vmatpush.msra.mxu0 %v100
    %118 = vmatpush.msra.mxu0 %v99
    %119 = vmatpush.msra.mxu0 %v98
    %120 = vmatpush.msra.mxu0 %v97
    %121 = vmatpush.msra.mxu0 %v96
    %122 = vmatpush.msra.mxu0 %v95
    %123 = vmatpush.msra.mxu0 %v94
    %124 = vmatpush.msra.mxu0 %v93
    %125 = vmatmul.f32.gmra.mxu0 %v74
    %v126 = vpop.f32.mrf.mxu0
    %v127 = vadd.f32 0.0, %v126
    %128 = vmatmul.f32.gmra.mxu0 %v75
    %v129 = vpop.f32.mrf.mxu0
    %v130 = vadd.f32 0.0, %v129
    %131 = vdwg.mxu0
    %132 = vmatpush.msra.mxu0 %v91
    %133 = vmatpush.msra.mxu0 %v90
    %134 = vmatpush.msra.mxu0 %v89
    %135 = vmatpush.msra.mxu0 %v88
    %136 = vmatpush.msra.mxu0 %v87
    %137 = vmatpush.msra.mxu0 %v86
    %138 = vmatpush.msra.mxu0 %v85
    %139 = vmatpush.msra.mxu0 %v84
    %140 = vmatpush.msra.mxu0 %v83
    %141 = vmatpush.msra.mxu0 %v82
    %142 = vmatpush.msra.mxu0 %v81
    %143 = vmatpush.msra.mxu0 %v80
    %144 = vmatpush.msra.mxu0 %v79
    %145 = vmatpush.msra.mxu0 %v78
    %146 = vmatpush.msra.mxu0 %v77
    %147 = vmatpush.msra.mxu0 %v76
    %148 = vmatmul.f32.gmra.mxu0 %v30
    %v149 = vpop.f32.mrf.mxu0
    %v150 = vadd.f32 %v127, %v149
    %151 = vmatmul.f32.gmra.mxu0 %v31
    %v152 = vpop.f32.mrf.mxu0
    %v153 = vadd.f32 %v130, %v152
    %154 = vdwg.mxu0
    %v155 = vld [vmem:[%s2] sm:$0x1]
    %v157 = vperm.slane %v155, 0
    %v159 = vadd.f32 %v150, %v157
    %v160 = vadd.f32 %v153, %v157
    %v161 = vmax.f32 %v159, 0.0
    %v162 = vmax.f32 %v160, 0.0
    %163 = vst [vmem:[%s3] sm:$0xff] %v161
    %164 = vst [vmem:[%s3 + $0x8] sm:$0xff] %v162
    // Predicated region
    $region18: #{up_crelu_conv_skip.3} parent=1 // pred_check
      _
    $region19: #{up_crelu_conv_skip.3} parent=1 // pred_check_branch
      %166 = sbr.rel (0) target = $region21
    $region20: #{up_crelu_conv_skip.3} parent=1 // pred_region
      _
    $region21: #{up_crelu_conv_skip.3} parent=1 // pred_fallthru
      _
    // Predicated region
    $region22: #{up_crelu_conv_skip.3} parent=1 // pred_check
      _
    $region23: #{up_crelu_conv_skip.3} parent=1 // pred_check_branch
      %168 = sbr.rel (0) target = $region25
    $region24: #{up_crelu_conv_skip.3} parent=1 // pred_region
      _
    $region25: #{up_crelu_conv_skip.3} parent=1 // pred_fallthru
      _
    %169 = vsyncpa [#allocation3], 1

// kernel: up_crelu_conv_skip.4
$region0: #{up_crelu_conv_skip.4}
  #allocation0 [shape = 'u32[]', space=smem, size = 0x4, offset = 0x4, fixed_abs, tag = 'smem constant byte address 0x4 - core index']
  #allocation1 [shape = 'u32[72,128]{1,0:T(1,128)}', space=vmem, size = 0x9000, scoped, tag = 'internal scratch']
  %s0 = inlined_call_operand.vmem [shape: f32[2,16,128], index: 0, kind: input, shape index: {}]
  %s1 = inlined_call_operand.vmem [shape: f32[2,128,64], index: 1, kind: input, shape index: {}]
  %s2 = inlined_call_operand.vmem [shape: f32[1,64], index: 2, kind: input, shape index: {}]
  %s3 = inlined_call_operand.vmem [shape: f32[2,16,64], index: 3, kind: output, shape index: {}]
  %s4 = sld [smem:[#allocation0]]
  $region22: #{up_crelu_conv_skip.4} parent=0
    _
  %s6 = ssub.s32 1, %s4
  %s7 = scalar_select 0, %s6, %s4
  // Predicated region
  $region2: #{up_crelu_conv_skip.4} parent=0 // pred_check
    _
  $region3: #{up_crelu_conv_skip.4} parent=0 // pred_check_branch
    %9 = sbr.rel (0) target = $region5
  $region4: #{up_crelu_conv_skip.4} parent=0 // pred_region
    _
  $region5: #{up_crelu_conv_skip.4} parent=0 // pred_fallthru
    _
  // Predicated region
  $region6: #{up_crelu_conv_skip.4} parent=0 // pred_check
    _
  $region7: #{up_crelu_conv_skip.4} parent=0 // pred_check_branch
    %11 = sbr.rel (0) target = $region9
  $region8: #{up_crelu_conv_skip.4} parent=0 // pred_region
    _
  $region9: #{up_crelu_conv_skip.4} parent=0 // pred_fallthru
    _
  // Predicated region
  $region10: #{up_crelu_conv_skip.4} parent=0 // pred_check
    _
  $region11: #{up_crelu_conv_skip.4} parent=0 // pred_check_branch
    %13 = sbr.rel (0) target = $region13
  $region12: #{up_crelu_conv_skip.4} parent=0 // pred_region
    _
  $region13: #{up_crelu_conv_skip.4} parent=0 // pred_fallthru
    _
  %v14 = vld [vmem:[%s0] sm:$0xff]
  %v15 = vld [vmem:[%s0 + $0x8] sm:$0xff]
  %v16 = vld [vmem:[%s0 + $0x10] sm:$0xff]
  %v17 = vld [vmem:[%s0 + $0x18] sm:$0xff]
  %vm22 = vcmask 1046528
  %v23 = vrot.slane %v14, 1
  %v24 = vrot.slane %v15, 1
  %v25 = vsel %vm22, %v23, %v24
  %v26 = vrot.slane %v16, 1
  %v27 = vsel %vm22, %v24, %v26
  %v28 = vrot.slane %v17, 1
  %v29 = vsel %vm22, %v26, %v28
  %v34 = vsel %vm22, %v28, 0.0
  %v35 = vlaneseq
  %v36 = vshrl.u32 %v35, 7
  %v37 = vadd.s32 %v36, 8
  %v38 = vadd.s32 %v36, 16
  %v39 = vadd.s32 %v36, 24
  %vm40 = vcmp.lt.s32.totalorder %v36, 0
  %v41 = vsub.s32 0, %v36
  %v42 = vsel %vm40, %v41, %v36
  %v43 = vshrl.u32 %v42, 4
  %v44 = vand.u32 %v42, 15
  %v45 = vsub.s32 0, %v44
  %v46 = vsel %vm40, %v45, %v44
  %vm47 = vcmp.lt.s32.totalorder %v37, 0
  %v48 = vsub.s32 0, %v37
  %v49 = vsel %vm47, %v48, %v37
  %v50 = vshrl.u32 %v49, 4
  %v51 = vand.u32 %v49, 15
  %v52 = vsub.s32 0, %v51
  %v53 = vsel %vm47, %v52, %v51
  %vm54 = vcmp.lt.s32.totalorder %v38, 0
  %v55 = vsub.s32 0, %v38
  %v56 = vsel %vm54, %v55, %v38
  %v57 = vshrl.u32 %v56, 4
  %v58 = vand.u32 %v56, 15
  %v59 = vsub.s32 0, %v58
  %v60 = vsel %vm54, %v59, %v58
  %vm61 = vcmp.lt.s32.totalorder %v39, 0
  %v62 = vsub.s32 0, %v39
  %v63 = vsel %vm61, %v62, %v39
  %v64 = vshrl.u32 %v63, 4
  %v65 = vand.u32 %v63, 15
  %v66 = vsub.s32 0, %v65
  %v67 = vsel %vm61, %v66, %v65
  %vm68 = vcmp.ne.s32.totalorder %v46, 0
  %vm69 = vcmp.ne.s32.totalorder %v53, 0
  %vm70 = vcmp.ne.s32.totalorder %v60, 0
  %vm71 = vcmp.ne.s32.totalorder %v67, 0
  %vm72 = vcmp.lt.s32.totalorder %v46, 0
  %vm73 = vcmp.lt.s32.totalorder %v53, 0
  %vm74 = vcmp.lt.s32.totalorder %v60, 0
  %vm75 = vcmp.lt.s32.totalorder %v67, 0
  %vm76 = vmand %vm72, %vm68
  %vm77 = vmand %vm73, %vm69
  %vm78 = vmand %vm74, %vm70
  %vm79 = vmand %vm75, %vm71
  %v80 = vadd.s32 %v46, 16
  %v81 = vadd.s32 %v53, 16
  %v82 = vadd.s32 %v60, 16
  %v83 = vadd.s32 %v67, 16
  %v84 = vsel %vm76, %v80, %v46
  %v85 = vsel %vm77, %v81, %v53
  %v86 = vsel %vm78, %v82, %v60
  %v87 = vsel %vm79, %v83, %v67
  %vm88 = vcmp.eq.s32.totalorder %v84, 15
  %vm89 = vcmp.eq.s32.totalorder %v85, 15
  %vm90 = vcmp.eq.s32.totalorder %v86, 15
  %vm91 = vcmp.eq.s32.totalorder %v87, 15
  %v92 = vsel %vm88, 1, 0
  %v93 = vsel %vm89, 1, 0
  %v94 = vsel %vm90, 1, 0
  %v95 = vsel %vm91, 1, 0
  %vm96 = vcmp.eq.s32.totalorder %v92, 1
  %vm97 = vcmp.eq.s32.totalorder %v93, 1
  %vm98 = vcmp.eq.s32.totalorder %v94, 1
  %vm99 = vcmp.eq.s32.totalorder %v95, 1
  %v100 = vsel %vm96, 0.0, %v25
  %v101 = vsel %vm97, 0.0, %v27
  %v102 = vsel %vm98, 0.0, %v29
  %v103 = vsel %vm99, 0.0, %v34
  %v104 = vld [vmem:[%s1] sm:$0xff]
  %v105 = vld [vmem:[%s1 + $0x8] sm:$0xff]
  %v106 = vld [vmem:[%s1 + $0x10] sm:$0xff]
  %v107 = vld [vmem:[%s1 + $0x18] sm:$0xff]
  %v108 = vld [vmem:[%s1 + $0x20] sm:$0xff]
  %v109 = vld [vmem:[%s1 + $0x28] sm:$0xff]
  %v110 = vld [vmem:[%s1 + $0x30] sm:$0xff]
  %v111 = vld [vmem:[%s1 + $0x38] sm:$0xff]
  %v112 = vld [vmem:[%s1 + $0x40] sm:$0xff]
  %v113 = vld [vmem:[%s1 + $0x48] sm:$0xff]
  %v114 = vld [vmem:[%s1 + $0x50] sm:$0xff]
  %v115 = vld [vmem:[%s1 + $0x58] sm:$0xff]
  %v116 = vld [vmem:[%s1 + $0x60] sm:$0xff]
  %v117 = vld [vmem:[%s1 + $0x68] sm:$0xff]
  %v118 = vld [vmem:[%s1 + $0x70] sm:$0xff]
  %v119 = vld [vmem:[%s1 + $0x78] sm:$0xff]
  %s120 = scalar_lea.vmem %s1, 128
  %v121 = vld [vmem:[%s120] sm:$0xff]
  %v122 = vld [vmem:[%s120 + $0x8] sm:$0xff]
  %v123 = vld [vmem:[%s120 + $0x10] sm:$0xff]
  %v124 = vld [vmem:[%s120 + $0x18] sm:$0xff]
  %v125 = vld [vmem:[%s120 + $0x20] sm:$0xff]
  %v126 = vld [vmem:[%s120 + $0x28] sm:$0xff]
  %v127 = vld [vmem:[%s120 + $0x30] sm:$0xff]
  %v128 = vld [vmem:[%s120 + $0x38] sm:$0xff]
  %v129 = vld [vmem:[%s120 + $0x40] sm:$0xff]
  %v130 = vld [vmem:[%s120 + $0x48] sm:$0xff]
  %v131 = vld [vmem:[%s120 + $0x50] sm:$0xff]
  %v132 = vld [vmem:[%s120 + $0x58] sm:$0xff]
  %v133 = vld [vmem:[%s120 + $0x60] sm:$0xff]
  %v134 = vld [vmem:[%s120 + $0x68] sm:$0xff]
  %v135 = vld [vmem:[%s120 + $0x70] sm:$0xff]
  %v136 = vld [vmem:[%s120 + $0x78] sm:$0xff]
  %137 = vmatpush.msra.mxu0 %v136
  %138 = vmatpush.msra.mxu0 %v135
  %139 = vmatpush.msra.mxu0 %v134
  %140 = vmatpush.msra.mxu0 %v133
  %141 = vmatpush.msra.mxu0 %v132
  %142 = vmatpush.msra.mxu0 %v131
  %143 = vmatpush.msra.mxu0 %v130
  %144 = vmatpush.msra.mxu0 %v129
  %145 = vmatpush.msra.mxu0 %v128
  %146 = vmatpush.msra.mxu0 %v127
  %147 = vmatpush.msra.mxu0 %v126
  %148 = vmatpush.msra.mxu0 %v125
  %149 = vmatpush.msra.mxu0 %v124
  %150 = vmatpush.msra.mxu0 %v123
  %151 = vmatpush.msra.mxu0 %v122
  %152 = vmatpush.msra.mxu0 %v121
  %153 = vmatmul.f32.gmra.mxu0 %v100
  %v154 = vpop.f32.mrf.mxu0
  %v155 = vadd.f32 0.0, %v154
  %156 = vmatmul.f32.gmra.mxu0 %v101
  %v157 = vpop.f32.mrf.mxu0
  %v158 = vadd.f32 0.0, %v157
  %159 = vmatmul.f32.gmra.mxu0 %v102
  %v160 = vpop.f32.mrf.mxu0
  %v161 = vadd.f32 0.0, %v160
  %162 = vmatmul.f32.gmra.mxu0 %v103
  %v163 = vpop.f32.mrf.mxu0
  %v164 = vadd.f32 0.0, %v163
  %165 = vdwg.mxu0
  %166 = vmatpush.msra.mxu0 %v119
  %167 = vmatpush.msra.mxu0 %v118
  %168 = vmatpush.msra.mxu0 %v117
  %169 = vmatpush.msra.mxu0 %v116
  %170 = vmatpush.msra.mxu0 %v115
  %171 = vmatpush.msra.mxu0 %v114
  %172 = vmatpush.msra.mxu0 %v113
  %173 = vmatpush.msra.mxu0 %v112
  %174 = vmatpush.msra.mxu0 %v111
  %175 = vmatpush.msra.mxu0 %v110
  %176 = vmatpush.msra.mxu0 %v109
  %177 = vmatpush.msra.mxu0 %v108
  %178 = vmatpush.msra.mxu0 %v107
  %179 = vmatpush.msra.mxu0 %v106
  %180 = vmatpush.msra.mxu0 %v105
  %181 = vmatpush.msra.mxu0 %v104
  %182 = vmatmul.f32.gmra.mxu0 %v14
  %v183 = vpop.f32.mrf.mxu0
  %v184 = vadd.f32 %v155, %v183
  %185 = vmatmul.f32.gmra.mxu0 %v15
  %v186 = vpop.f32.mrf.mxu0
  %v187 = vadd.f32 %v158, %v186
  %188 = vmatmul.f32.gmra.mxu0 %v16
  %v189 = vpop.f32.mrf.mxu0
  %v190 = vadd.f32 %v161, %v189
  %191 = vmatmul.f32.gmra.mxu0 %v17
  %v192 = vpop.f32.mrf.mxu0
  %v193 = vadd.f32 %v164, %v192
  %194 = vdwg.mxu0
  %v195 = vld [vmem:[%s2] sm:$0x1]
  %v197 = vperm.slane %v195, 0
  %v199 = vadd.f32 %v184, %v197
  %v200 = vadd.f32 %v187, %v197
  %v201 = vadd.f32 %v190, %v197
  %v202 = vadd.f32 %v193, %v197
  %v203 = vmax.f32 %v199, 0.0
  %v204 = vmax.f32 %v200, 0.0
  %v205 = vmax.f32 %v201, 0.0
  %v206 = vmax.f32 %v202, 0.0
  %vm207 = vcmask 523264
  %208 = vst.msk [vmem:[%s3] sm:$0xff] %vm207, %v203
  %209 = vst.msk [vmem:[%s3 + $0x8] sm:$0xff] %vm207, %v204
  %210 = vst.msk [vmem:[%s3 + $0x10] sm:$0xff] %vm207, %v205
  %211 = vst.msk [vmem:[%s3 + $0x18] sm:$0xff] %vm207, %v206
  // Predicated region
  $region14: #{up_crelu_conv_skip.4} parent=0 // pred_check
    _
  $region15: #{up_crelu_conv_skip.4} parent=0 // pred_check_branch
    %213 = sbr.rel (0) target = $region17
  $region16: #{up_crelu_conv_skip.4} parent=0 // pred_region
    _
  $region17: #{up_crelu_conv_skip.4} parent=0 // pred_fallthru
    _
  // Predicated region
  $region18: #{up_crelu_conv_skip.4} parent=0 // pred_check
    _
  $region19: #{up_crelu_conv_skip.4} parent=0 // pred_check_branch
    %215 = sbr.rel (0) target = $region21
  $region20: #{up_crelu_conv_skip.4} parent=0 // pred_region
    _
  $region21: #{up_crelu_conv_skip.4} parent=0 // pred_fallthru
    _

// kernel: up_crelu_conv_skip.5
$region0: #{up_crelu_conv_skip.5}
  #allocation0 [shape = 'u32[]', space=smem, size = 0x4, offset = 0x4, fixed_abs, tag = 'smem constant byte address 0x4 - core index']
  #allocation1 [shape = 'u32[72,128]{1,0:T(1,128)}', space=vmem, size = 0x9000, scoped, tag = 'internal scratch']
  %s0 = inlined_call_operand.vmem [shape: f32[2,32,64], index: 0, kind: input, shape index: {}]
  %s1 = inlined_call_operand.vmem [shape: f32[2,64,32], index: 1, kind: input, shape index: {}]
  %s2 = inlined_call_operand.vmem [shape: f32[1,32], index: 2, kind: input, shape index: {}]
  %s3 = inlined_call_operand.vmem [shape: f32[2,32,32], index: 3, kind: output, shape index: {}]
  %s4 = sld [smem:[#allocation0]]
  $region22: #{up_crelu_conv_skip.5} parent=0
    _
  %s6 = ssub.s32 1, %s4
  %s7 = scalar_select 0, %s6, %s4
  // Predicated region
  $region2: #{up_crelu_conv_skip.5} parent=0 // pred_check
    _
  $region3: #{up_crelu_conv_skip.5} parent=0 // pred_check_branch
    %9 = sbr.rel (0) target = $region5
  $region4: #{up_crelu_conv_skip.5} parent=0 // pred_region
    _
  $region5: #{up_crelu_conv_skip.5} parent=0 // pred_fallthru
    _
  // Predicated region
  $region6: #{up_crelu_conv_skip.5} parent=0 // pred_check
    _
  $region7: #{up_crelu_conv_skip.5} parent=0 // pred_check_branch
    %11 = sbr.rel (0) target = $region9
  $region8: #{up_crelu_conv_skip.5} parent=0 // pred_region
    _
  $region9: #{up_crelu_conv_skip.5} parent=0 // pred_fallthru
    _
  // Predicated region
  $region10: #{up_crelu_conv_skip.5} parent=0 // pred_check
    _
  $region11: #{up_crelu_conv_skip.5} parent=0 // pred_check_branch
    %13 = sbr.rel (0) target = $region13
  $region12: #{up_crelu_conv_skip.5} parent=0 // pred_region
    _
  $region13: #{up_crelu_conv_skip.5} parent=0 // pred_fallthru
    _
  %v14 = vld [vmem:[%s0] sm:$0xff]
  %v15 = vld [vmem:[%s0 + $0x8] sm:$0xff]
  %v16 = vld [vmem:[%s0 + $0x10] sm:$0xff]
  %v17 = vld [vmem:[%s0 + $0x18] sm:$0xff]
  %v18 = vld [vmem:[%s0 + $0x20] sm:$0xff]
  %v19 = vld [vmem:[%s0 + $0x28] sm:$0xff]
  %v20 = vld [vmem:[%s0 + $0x30] sm:$0xff]
  %v21 = vld [vmem:[%s0 + $0x38] sm:$0xff]
  %vm30 = vcmask 1046528
  %v31 = vrot.slane %v14, 1
  %v32 = vrot.slane %v15, 1
  %v33 = vsel %vm30, %v31, %v32
  %v34 = vrot.slane %v16, 1
  %v35 = vsel %vm30, %v32, %v34
  %v36 = vrot.slane %v17, 1
  %v37 = vsel %vm30, %v34, %v36
  %v38 = vrot.slane %v18, 1
  %v39 = vsel %vm30, %v36, %v38
  %v40 = vrot.slane %v19, 1
  %v41 = vsel %vm30, %v38, %v40
  %v42 = vrot.slane %v20, 1
  %v43 = vsel %vm30, %v40, %v42
  %v44 = vrot.slane %v21, 1
  %v45 = vsel %vm30, %v42, %v44
  %v54 = vsel %vm30, %v44, 0.0
  %v55 = vlaneseq
  %v56 = vshrl.u32 %v55, 7
  %v57 = vadd.s32 %v56, 8
  %v58 = vadd.s32 %v56, 16
  %v59 = vadd.s32 %v56, 24
  %v60 = vadd.s32 %v56, 32
  %v61 = vadd.s32 %v56, 40
  %v62 = vadd.s32 %v56, 48
  %v63 = vadd.s32 %v56, 56
  %vm64 = vcmp.lt.s32.totalorder %v56, 0
  %v65 = vsub.s32 0, %v56
  %v66 = vsel %vm64, %v65, %v56
  %v67 = vshrl.u32 %v66, 5
  %v68 = vand.u32 %v66, 31
  %v69 = vsub.s32 0, %v68
  %v70 = vsel %vm64, %v69, %v68
  %vm71 = vcmp.lt.s32.totalorder %v57, 0
  %v72 = vsub.s32 0, %v57
  %v73 = vsel %vm71, %v72, %v57
  %v74 = vshrl.u32 %v73, 5
  %v75 = vand.u32 %v73, 31
  %v76 = vsub.s32 0, %v75
  %v77 = vsel %vm71, %v76, %v75
  %vm78 = vcmp.lt.s32.totalorder %v58, 0
  %v79 = vsub.s32 0, %v58
  %v80 = vsel %vm78, %v79, %v58
  %v81 = vshrl.u32 %v80, 5
  %v82 = vand.u32 %v80, 31
  %v83 = vsub.s32 0, %v82
  %v84 = vsel %vm78, %v83, %v82
  %vm85 = vcmp.lt.s32.totalorder %v59, 0
  %v86 = vsub.s32 0, %v59
  %v87 = vsel %vm85, %v86, %v59
  %v88 = vshrl.u32 %v87, 5
  %v89 = vand.u32 %v87, 31
  %v90 = vsub.s32 0, %v89
  %v91 = vsel %vm85, %v90, %v89
  %vm92 = vcmp.lt.s32.totalorder %v60, 0
  %v93 = vsub.s32 0, %v60
  %v94 = vsel %vm92, %v93, %v60
  %v95 = vshrl.u32 %v94, 5
  %v96 = vand.u32 %v94, 31
  %v97 = vsub.s32 0, %v96
  %v98 = vsel %vm92, %v97, %v96
  %vm99 = vcmp.lt.s32.totalorder %v61, 0
  %v100 = vsub.s32 0, %v61
  %v101 = vsel %vm99, %v100, %v61
  %v102 = vshrl.u32 %v101, 5
  %v103 = vand.u32 %v101, 31
  %v104 = vsub.s32 0, %v103
  %v105 = vsel %vm99, %v104, %v103
  %vm106 = vcmp.lt.s32.totalorder %v62, 0
  %v107 = vsub.s32 0, %v62
  %v108 = vsel %vm106, %v107, %v62
  %v109 = vshrl.u32 %v108, 5
  %v110 = vand.u32 %v108, 31
  %v111 = vsub.s32 0, %v110
  %v112 = vsel %vm106, %v111, %v110
  %vm113 = vcmp.lt.s32.totalorder %v63, 0
  %v114 = vsub.s32 0, %v63
  %v115 = vsel %vm113, %v114, %v63
  %v116 = vshrl.u32 %v115, 5
  %v117 = vand.u32 %v115, 31
  %v118 = vsub.s32 0, %v117
  %v119 = vsel %vm113, %v118, %v117
  %vm120 = vcmp.ne.s32.totalorder %v70, 0
  %vm121 = vcmp.ne.s32.totalorder %v77, 0
  %vm122 = vcmp.ne.s32.totalorder %v84, 0
  %vm123 = vcmp.ne.s32.totalorder %v91, 0
  %vm124 = vcmp.ne.s32.totalorder %v98, 0
  %vm125 = vcmp.ne.s32.totalorder %v105, 0
  %vm126 = vcmp.ne.s32.totalorder %v112, 0
  %vm127 = vcmp.ne.s32.totalorder %v119, 0
  %vm128 = vcmp.lt.s32.totalorder %v70, 0
  %vm129 = vcmp.lt.s32.totalorder %v77, 0
  %vm130 = vcmp.lt.s32.totalorder %v84, 0
  %vm131 = vcmp.lt.s32.totalorder %v91, 0
  %vm132 = vcmp.lt.s32.totalorder %v98, 0
  %vm133 = vcmp.lt.s32.totalorder %v105, 0
  %vm134 = vcmp.lt.s32.totalorder %v112, 0
  %vm135 = vcmp.lt.s32.totalorder %v119, 0
  %vm136 = vmand %vm128, %vm120
  %vm137 = vmand %vm129, %vm121
  %vm138 = vmand %vm130, %vm122
  %vm139 = vmand %vm131, %vm123
  %vm140 = vmand %vm132, %vm124
  %vm141 = vmand %vm133, %vm125
  %vm142 = vmand %vm134, %vm126
  %vm143 = vmand %vm135, %vm127
  %v144 = vadd.s32 %v70, 32
  %v145 = vadd.s32 %v77, 32
  %v146 = vadd.s32 %v84, 32
  %v147 = vadd.s32 %v91, 32
  %v148 = vadd.s32 %v98, 32
  %v149 = vadd.s32 %v105, 32
  %v150 = vadd.s32 %v112, 32
  %v151 = vadd.s32 %v119, 32
  %v152 = vsel %vm136, %v144, %v70
  %v153 = vsel %vm137, %v145, %v77
  %v154 = vsel %vm138, %v146, %v84
  %v155 = vsel %vm139, %v147, %v91
  %v156 = vsel %vm140, %v148, %v98
  %v157 = vsel %vm141, %v149, %v105
  %v158 = vsel %vm142, %v150, %v112
  %v159 = vsel %vm143, %v151, %v119
  %vm160 = vcmp.eq.s32.totalorder %v152, 31
  %vm161 = vcmp.eq.s32.totalorder %v153, 31
  %vm162 = vcmp.eq.s32.totalorder %v154, 31
  %vm163 = vcmp.eq.s32.totalorder %v155, 31
  %vm164 = vcmp.eq.s32.totalorder %v156, 31
  %vm165 = vcmp.eq.s32.totalorder %v157, 31
  %vm166 = vcmp.eq.s32.totalorder %v158, 31
  %vm167 = vcmp.eq.s32.totalorder %v159, 31
  %v168 = vsel %vm160, 1, 0
  %v169 = vsel %vm161, 1, 0
  %v170 = vsel %vm162, 1, 0
  %v171 = vsel %vm163, 1, 0
  %v172 = vsel %vm164, 1, 0
  %v173 = vsel %vm165, 1, 0
  %v174 = vsel %vm166, 1, 0
  %v175 = vsel %vm167, 1, 0
  %vm176 = vcmp.eq.s32.totalorder %v168, 1
  %vm177 = vcmp.eq.s32.totalorder %v169, 1
  %vm178 = vcmp.eq.s32.totalorder %v170, 1
  %vm179 = vcmp.eq.s32.totalorder %v171, 1
  %vm180 = vcmp.eq.s32.totalorder %v172, 1
  %vm181 = vcmp.eq.s32.totalorder %v173, 1
  %vm182 = vcmp.eq.s32.totalorder %v174, 1
  %vm183 = vcmp.eq.s32.totalorder %v175, 1
  %v184 = vsel %vm176, 0.0, %v33
  %v185 = vsel %vm177, 0.0, %v35
  %v186 = vsel %vm178, 0.0, %v37
  %v187 = vsel %vm179, 0.0, %v39
  %v188 = vsel %vm180, 0.0, %v41
  %v189 = vsel %vm181, 0.0, %v43
  %v190 = vsel %vm182, 0.0, %v45
  %v191 = vsel %vm183, 0.0, %v54
  %v192 = vld [vmem:[%s1] sm:$0xff]
  %v193 = vld [vmem:[%s1 + $0x8] sm:$0xff]
  %v194 = vld [vmem:[%s1 + $0x10] sm:$0xff]
  %v195 = vld [vmem:[%s1 + $0x18] sm:$0xff]
  %v196 = vld [vmem:[%s1 + $0x20] sm:$0xff]
  %v197 = vld [vmem:[%s1 + $0x28] sm:$0xff]
  %v198 = vld [vmem:[%s1 + $0x30] sm:$0xff]
  %v199 = vld [vmem:[%s1 + $0x38] sm:$0xff]
  %s200 = scalar_lea.vmem %s1, 64
  %v201 = vld [vmem:[%s200] sm:$0xff]
  %v202 = vld [vmem:[%s200 + $0x8] sm:$0xff]
  %v203 = vld [vmem:[%s200 + $0x10] sm:$0xff]
  %v204 = vld [vmem:[%s200 + $0x18] sm:$0xff]
  %v205 = vld [vmem:[%s200 + $0x20] sm:$0xff]
  %v206 = vld [vmem:[%s200 + $0x28] sm:$0xff]
  %v207 = vld [vmem:[%s200 + $0x30] sm:$0xff]
  %v208 = vld [vmem:[%s200 + $0x38] sm:$0xff]
  %vm209 = vcmask 523264
  %v211 = vsel %vm209, %v184, 0
  %v214 = vsel %vm209, %v185, 0
  %v217 = vsel %vm209, %v186, 0
  %v220 = vsel %vm209, %v187, 0
  %v223 = vsel %vm209, %v188, 0
  %v226 = vsel %vm209, %v189, 0
  %v229 = vsel %vm209, %v190, 0
  %v232 = vsel %vm209, %v191, 0
  %234 = vmatpush.msra.mxu0 0.0
  %235 = vmatpush.msra.mxu0 0.0
  %236 = vmatpush.msra.mxu0 0.0
  %237 = vmatpush.msra.mxu0 0.0
  %238 = vmatpush.msra.mxu0 0.0
  %239 = vmatpush.msra.mxu0 0.0
  %240 = vmatpush.msra.mxu0 0.0
  %241 = vmatpush.msra.mxu0 0.0
  %242 = vmatpush.msra.mxu0 %v208
  %243 = vmatpush.msra.mxu0 %v207
  %244 = vmatpush.msra.mxu0 %v206
  %245 = vmatpush.msra.mxu0 %v205
  %246 = vmatpush.msra.mxu0 %v204
  %247 = vmatpush.msra.mxu0 %v203
  %248 = vmatpush.msra.mxu0 %v202
  %249 = vmatpush.msra.mxu0 %v201
  %250 = vmatmul.f32.gmra.mxu0 %v211
  %v251 = vpop.f32.mrf.mxu0
  %v252 = vadd.f32 0.0, %v251
  %253 = vmatmul.f32.gmra.mxu0 %v214
  %v254 = vpop.f32.mrf.mxu0
  %v255 = vadd.f32 0.0, %v254
  %256 = vmatmul.f32.gmra.mxu0 %v217
  %v257 = vpop.f32.mrf.mxu0
  %v258 = vadd.f32 0.0, %v257
  %259 = vmatmul.f32.gmra.mxu0 %v220
  %v260 = vpop.f32.mrf.mxu0
  %v261 = vadd.f32 0.0, %v260
  %262 = vmatmul.f32.gmra.mxu0 %v223
  %v263 = vpop.f32.mrf.mxu0
  %v264 = vadd.f32 0.0, %v263
  %265 = vmatmul.f32.gmra.mxu0 %v226
  %v266 = vpop.f32.mrf.mxu0
  %v267 = vadd.f32 0.0, %v266
  %268 = vmatmul.f32.gmra.mxu0 %v229
  %v269 = vpop.f32.mrf.mxu0
  %v270 = vadd.f32 0.0, %v269
  %271 = vmatmul.f32.gmra.mxu0 %v232
  %v272 = vpop.f32.mrf.mxu0
  %v273 = vadd.f32 0.0, %v272
  %274 = vdwg.mxu0
  %v275 = vsel %vm209, %v14, 0
  %v277 = vsel %vm209, %v15, 0
  %v279 = vsel %vm209, %v16, 0
  %v281 = vsel %vm209, %v17, 0
  %v283 = vsel %vm209, %v18, 0
  %v285 = vsel %vm209, %v19, 0
  %v287 = vsel %vm209, %v20, 0
  %v289 = vsel %vm209, %v21, 0
  %291 = vmatpush.msra.mxu0 0.0
  %292 = vmatpush.msra.mxu0 0.0
  %293 = vmatpush.msra.mxu0 0.0
  %294 = vmatpush.msra.mxu0 0.0
  %295 = vmatpush.msra.mxu0 0.0
  %296 = vmatpush.msra.mxu0 0.0
  %297 = vmatpush.msra.mxu0 0.0
  %298 = vmatpush.msra.mxu0 0.0
  %299 = vmatpush.msra.mxu0 %v199
  %300 = vmatpush.msra.mxu0 %v198
  %301 = vmatpush.msra.mxu0 %v197
  %302 = vmatpush.msra.mxu0 %v196
  %303 = vmatpush.msra.mxu0 %v195
  %304 = vmatpush.msra.mxu0 %v194
  %305 = vmatpush.msra.mxu0 %v193
  %306 = vmatpush.msra.mxu0 %v192
  %307 = vmatmul.f32.gmra.mxu0 %v275
  %v308 = vpop.f32.mrf.mxu0
  %v309 = vadd.f32 %v252, %v308
  %310 = vmatmul.f32.gmra.mxu0 %v277
  %v311 = vpop.f32.mrf.mxu0
  %v312 = vadd.f32 %v255, %v311
  %313 = vmatmul.f32.gmra.mxu0 %v279
  %v314 = vpop.f32.mrf.mxu0
  %v315 = vadd.f32 %v258, %v314
  %316 = vmatmul.f32.gmra.mxu0 %v281
  %v317 = vpop.f32.mrf.mxu0
  %v318 = vadd.f32 %v261, %v317
  %319 = vmatmul.f32.gmra.mxu0 %v283
  %v320 = vpop.f32.mrf.mxu0
  %v321 = vadd.f32 %v264, %v320
  %322 = vmatmul.f32.gmra.mxu0 %v285
  %v323 = vpop.f32.mrf.mxu0
  %v324 = vadd.f32 %v267, %v323
  %325 = vmatmul.f32.gmra.mxu0 %v287
  %v326 = vpop.f32.mrf.mxu0
  %v327 = vadd.f32 %v270, %v326
  %328 = vmatmul.f32.gmra.mxu0 %v289
  %v329 = vpop.f32.mrf.mxu0
  %v330 = vadd.f32 %v273, %v329
  %331 = vdwg.mxu0
  %v332 = vld [vmem:[%s2] sm:$0x1]
  %v334 = vperm.slane %v332, 0
  %v336 = vadd.f32 %v309, %v334
  %v337 = vadd.f32 %v312, %v334
  %v338 = vadd.f32 %v315, %v334
  %v339 = vadd.f32 %v318, %v334
  %v340 = vadd.f32 %v321, %v334
  %v341 = vadd.f32 %v324, %v334
  %v342 = vadd.f32 %v327, %v334
  %v343 = vadd.f32 %v330, %v334
  %v344 = vmax.f32 %v336, 0.0
  %v345 = vmax.f32 %v337, 0.0
  %v346 = vmax.f32 %v338, 0.0
  %v347 = vmax.f32 %v339, 0.0
  %v348 = vmax.f32 %v340, 0.0
  %v349 = vmax.f32 %v341, 0.0
  %v350 = vmax.f32 %v342, 0.0
  %v351 = vmax.f32 %v343, 0.0
  %vm352 = vcmask 261120
  %353 = vst.msk [vmem:[%s3] sm:$0xff] %vm352, %v344
  %354 = vst.msk [vmem:[%s3 + $0x8] sm:$0xff] %vm352, %v345
  %355 = vst.msk [vmem:[%s3 + $0x10] sm:$0xff] %vm352, %v346
  %356 = vst.msk [vmem:[%s3 + $0x18] sm:$0xff] %vm352, %v347
  %357 = vst.msk [vmem:[%s3 + $0x20] sm:$0xff] %vm352, %v348
  %358 = vst.msk [vmem:[%s3 + $0x28] sm:$0xff] %vm352, %v349
  %359 = vst.msk [vmem:[%s3 + $0x30] sm:$0xff] %vm352, %v350
  %360 = vst.msk [vmem:[%s3 + $0x38] sm:$0xff] %vm352, %v351
  // Predicated region
  $region14: #{up_crelu_conv_skip.5} parent=0 // pred_check
    _
  $region15: #{up_crelu_conv_skip.5} parent=0 // pred_check_branch
    %362 = sbr.rel (0) target = $region17
  $region16: #{up_crelu_conv_skip.5} parent=0 // pred_region
    _
  $region17: #{up_crelu_conv_skip.5} parent=0 // pred_fallthru
    _
  // Predicated region
  $region18: #{up_crelu_conv_skip.5} parent=0 // pred_check
    _
  $region19: #{up_crelu_conv_skip.5} parent=0 // pred_check_branch
    %364 = sbr.rel (0) target = $region21
  $region20: #{up_crelu_conv_skip.5} parent=0 // pred_region
    _
  $region21: #{up_crelu_conv_skip.5} parent=0 // pred_fallthru
    _

</llo_original>
